<compile_context>
chip_gen: v5e
topology: v5e:2x2
jax: 0.10.0
libtpu: 0.0.40
codegen_flags: <defaults>
</compile_context>

<pallas_src>
import functools

import jax
import jax.numpy as jnp
from jax.experimental import pallas as pl
from jax.experimental.pallas import tpu as pltpu

_SUBLANE = 8


def _round_up(n, m):
    return (n + m - 1) // m * m


def _mlp_kernel(x_ref, w1_ref, b1_ref, w2_ref, b2_ref, o_ref):
    # Both dots hit the MXU (f32 accumulate); tanh/exp hit the EUP slot.
    x = x_ref[...]
    h = jnp.tanh(
        jnp.dot(x, w1_ref[...], preferred_element_type=jnp.float32) + b1_ref[...]
    )
    z = jnp.dot(h, w2_ref[...], preferred_element_type=jnp.float32) + b2_ref[...]
    # Exact sigmoid; exp(-z) -> inf for very negative z gives 1/inf = 0 (correct limit).
    o_ref[...] = (1.0 / (1.0 + jnp.exp(-z))).astype(o_ref.dtype)


def linear_network_forward(x, w1, b1, w2, b2, *, block_batch=2048, small_batch=512):
    """Forward pass of Linear_network.

    x:  (B, in_size)  f32
    w1: (in_size, hid_size)   (transposed vs. PyTorch nn.Linear storage)
    b1: (hid_size,) or (1, hid_size)
    w2: (hid_size, out_size)
    b2: (out_size,) or (1, out_size)
    """
    B, in_size = x.shape
    hid_size = w1.shape[1]
    out_size = w2.shape[1]
    f32 = jnp.float32

    x = x.astype(f32)
    w1 = w1.astype(f32)
    w2 = w2.astype(f32)
    b1 = jnp.reshape(b1, (1, hid_size)).astype(f32)
    b2 = jnp.reshape(b2, (1, out_size)).astype(f32)

    if B <= small_batch:
        # Small batch: single invocation, no grid / pipelining bookkeeping.
        # Every operand is a full-array VMEM block (a few KiB total).
        return pl.pallas_call(
            _mlp_kernel,
            out_shape=jax.ShapeDtypeStruct((B, out_size), f32),
            in_specs=[pl.BlockSpec(memory_space=pltpu.MemorySpace.VMEM)] * 5,
            out_specs=pl.BlockSpec(memory_space=pltpu.MemorySpace.VMEM),
        )(x, w1, b1, w2, b2)

    # Large batch: stream unpadded (tb, in_size)/(tb, out_size) activation tiles
    # with double-buffered HBM<->VMEM overlap; weights/biases stay resident in
    # VMEM (constant index_map across the grid).  Target >= ~8 grid steps so the
    # parallel batch axis shards across v7x's two TensorCores, but cap the tile
    # at block_batch rows.
    target_steps = 8
    tb = _round_up(pl.cdiv(B, target_steps), _SUBLANE)
    tb = max(_SUBLANE, min(block_batch, tb))
    grid = (pl.cdiv(B, tb),)  # ragged last block: OOB reads ignored per-row, OOB writes dropped

    return pl.pallas_call(
        _mlp_kernel,
        out_shape=jax.ShapeDtypeStruct((B, out_size), f32),
        grid=grid,
        in_specs=[
            pl.BlockSpec((tb, in_size), lambda i: (i, 0)),        # x tile (unpadded lanes)
            pl.BlockSpec((in_size, hid_size), lambda i: (0, 0)),  # W1 resident
            pl.BlockSpec((1, hid_size), lambda i: (0, 0)),        # b1 resident
            pl.BlockSpec((hid_size, out_size), lambda i: (0, 0)), # W2 resident
            pl.BlockSpec((1, out_size), lambda i: (0, 0)),        # b2 resident
        ],
        out_specs=pl.BlockSpec((tb, out_size), lambda i: (i, 0)),
        compiler_params=pltpu.CompilerParams(
            dimension_semantics=("parallel",)),
    )(x, w1, b1, w2, b2)


if __name__ == "__main__":
    # Module hyperparameters (small MLP, consistent with the PyTorch spec).
    batch, in_size, hid_size, out_size = 8, 16, 32, 8

    key = jax.random.PRNGKey(0)
    kx, k1, kb1, k2, kb2 = jax.random.split(key, 5)

    # Deterministic init mimicking nn.Linear uniform(-1/sqrt(fan_in), 1/sqrt(fan_in)).
    bound1 = 1.0 / jnp.sqrt(in_size)
    bound2 = 1.0 / jnp.sqrt(hid_size)
    x = jax.random.normal(kx, (batch, in_size), dtype=jnp.float32)
    # Stored as (in, hid) / (hid, out), i.e. transposed vs PyTorch's
    # (out_features, in_features) layout.
    w1 = jax.random.uniform(k1, (in_size, hid_size), jnp.float32, -bound1, bound1)
    b1 = jax.random.uniform(kb1, (hid_size,), jnp.float32, -bound1, bound1)
    w2 = jax.random.uniform(k2, (hid_size, out_size), jnp.float32, -bound2, bound2)
    b2 = jax.random.uniform(kb2, (out_size,), jnp.float32, -bound2, bound2)

    def ref_fwd(x_):
        return jax.nn.sigmoid(jnp.tanh(x_ @ w1 + b1) @ w2 + b2)

    fwd = jax.jit(functools.partial(linear_network_forward))

    # Small-batch path (single full-array VMEM block, no grid).
    y = fwd(x, w1, b1, w2, b2)
    jax.block_until_ready(y)
    assert y.shape == (batch, out_size)
    assert jnp.allclose(y, ref_fwd(x), atol=1e-3, rtol=1e-3)

    # Batch-tiled path, evenly divided grid (B=4096 -> 8 tiles of 512 rows).
    big_batch = 4096
    xb = jax.random.normal(jax.random.PRNGKey(1), (big_batch, in_size), jnp.float32)
    yb = fwd(xb, w1, b1, w2, b2)
    jax.block_until_ready(yb)
    assert yb.shape == (big_batch, out_size)
    assert jnp.allclose(yb, ref_fwd(xb), atol=1e-3, rtol=1e-3)

    # Batch-tiled path with a ragged last block (B not a multiple of the tile).
    rag_batch = 1000
    xr = jax.random.normal(jax.random.PRNGKey(2), (rag_batch, in_size), jnp.float32)
    yr = fwd(xr, w1, b1, w2, b2)
    jax.block_until_ready(yr)
    assert yr.shape == (rag_batch, out_size)
    assert jnp.allclose(yr, ref_fwd(xr), atol=1e-3, rtol=1e-3)

    print("KERNEL_OK")
</pallas_src>

<mosaic_0001>
module attributes {stable_mosaic.version = 11 : i64} {
  func.func @_mlp_kernel(%arg0: memref<8x16xf32, #tpu.memory_space<vmem>>, %arg1: memref<16x32xf32, #tpu.memory_space<vmem>>, %arg2: memref<1x32xf32, #tpu.memory_space<vmem>>, %arg3: memref<32x8xf32, #tpu.memory_space<vmem>>, %arg4: memref<1x8xf32, #tpu.memory_space<vmem>>, %arg5: memref<8x8xf32, #tpu.memory_space<vmem>>) attributes {dimension_semantics = [], scalar_prefetch = 0 : i64, scratch_operands = 0 : i64, tpu.core_type = #tpu.core_type<tc>} {
    %c0 = arith.constant 0 : index
    %c0_0 = arith.constant 0 : index
    %0 = vector.load %arg0[%c0, %c0_0] : memref<8x16xf32, #tpu.memory_space<vmem>>, vector<8x16xf32>
    %c0_1 = arith.constant 0 : index
    %c0_2 = arith.constant 0 : index
    %1 = vector.load %arg1[%c0_1, %c0_2] : memref<16x32xf32, #tpu.memory_space<vmem>>, vector<16x32xf32>
    %cst = arith.constant dense<0.000000e+00> : vector<8x32xf32>
    %2 = tpu.matmul %0, %1, %cst {dimension_numbers = #tpu.dot_dimension_numbers<[1], [0], [0], [1], [0, 0, 1, 1], [], []>} : vector<8x16xf32>, vector<16x32xf32>, vector<8x32xf32> -> vector<8x32xf32>
    %c0_3 = arith.constant 0 : index
    %c0_4 = arith.constant 0 : index
    %3 = vector.load %arg2[%c0_3, %c0_4] : memref<1x32xf32, #tpu.memory_space<vmem>>, vector<1x32xf32>
    %4 = vector.broadcast %3 : vector<1x32xf32> to vector<8x32xf32>
    %5 = arith.addf %2, %4 : vector<8x32xf32>
    %6 = math.tanh %5 : vector<8x32xf32>
    %c0_5 = arith.constant 0 : index
    %c0_6 = arith.constant 0 : index
    %7 = vector.load %arg3[%c0_5, %c0_6] : memref<32x8xf32, #tpu.memory_space<vmem>>, vector<32x8xf32>
    %cst_7 = arith.constant dense<0.000000e+00> : vector<8x8xf32>
    %8 = tpu.matmul %6, %7, %cst_7 {dimension_numbers = #tpu.dot_dimension_numbers<[1], [0], [0], [1], [0, 0, 1, 1], [], []>} : vector<8x32xf32>, vector<32x8xf32>, vector<8x8xf32> -> vector<8x8xf32>
    %c0_8 = arith.constant 0 : index
    %c0_9 = arith.constant 0 : index
    %9 = vector.load %arg4[%c0_8, %c0_9] : memref<1x8xf32, #tpu.memory_space<vmem>>, vector<1x8xf32>
    %10 = vector.broadcast %9 : vector<1x8xf32> to vector<8x8xf32>
    %11 = arith.addf %8, %10 : vector<8x8xf32>
    %cst_10 = arith.constant 0.000000e+00 : f32
    %12 = vector.broadcast %cst_10 : f32 to vector<8x8xf32>
    %13 = arith.subf %12, %11 : vector<8x8xf32>
    %14 = math.exp %13 : vector<8x8xf32>
    %cst_11 = arith.constant 1.000000e+00 : f32
    %15 = vector.broadcast %cst_11 : f32 to vector<8x8xf32>
    %16 = arith.addf %15, %14 : vector<8x8xf32>
    %cst_12 = arith.constant 1.000000e+00 : f32
    %17 = vector.broadcast %cst_12 : f32 to vector<8x8xf32>
    %18 = arith.divf %17, %16 : vector<8x8xf32>
    %c0_13 = arith.constant 0 : index
    %c0_14 = arith.constant 0 : index
    %19 = vector.load %arg5[%c0_13, %c0_14] : memref<8x8xf32, #tpu.memory_space<vmem>>, vector<8x8xf32>
    tpu.vector_store %arg5[%c0_13, %c0_14], %18 {strides = array<i32>} : memref<8x8xf32, #tpu.memory_space<vmem>>, vector<8x8xf32>,
    return
  }
}

</mosaic_0001>

<llo_original>
// kernel: linear_network_forward.1
$region0: #{linear_network_forward.1}
  #allocation0 [shape = 'u32[]', space=smem, size = 0x4, offset = 0x4, fixed_abs, tag = 'smem constant byte address 0x4 - core index']
  #allocation1 [shape = 'u32[72,128]{1,0:T(1,128)}', space=vmem, size = 0x9000, scoped, tag = 'internal scratch']
  %s0 = inlined_call_operand.vmem [shape: f32[8,16], index: 0, kind: input, shape index: {}]
  %s1 = inlined_call_operand.vmem [shape: f32[16,32], index: 1, kind: input, shape index: {}]
  %s2 = inlined_call_operand.vmem [shape: f32[1,32], index: 2, kind: input, shape index: {}]
  %s3 = inlined_call_operand.vmem [shape: f32[32,8], index: 3, kind: input, shape index: {}]
  %s4 = inlined_call_operand.vmem [shape: f32[1,8], index: 4, kind: input, shape index: {}]
  %s5 = inlined_call_operand.hbm [shape: f32[8,8], index: 5, kind: output, shape index: {}]
  %s6 = sld [smem:[#allocation0]]
  $region30: #{linear_network_forward.1} parent=0
    _
  %s8 = ssub.s32 1, %s6
  %s9 = scalar_select 0, %s8, %s6
  $region1: #{linear_network_forward.1} parent=0
    #allocation2 [shape = 'u8[4096]{0}', space=vmem, size = 0x1000, scoped, tag = 'output window, operand 0, single buffered']
    #allocation3 [shape = 's32[1]{0}', space=sflag, size = 0x4, scoped, tag = 'scoped memory for linear_network_forward.1']
    %10 = vsyncpa [#allocation3], 0
    // Predicated region
    $region2: #{linear_network_forward.1} parent=1 // pred_check
      _
    $region3: #{linear_network_forward.1} parent=1 // pred_check_branch
      %12 = sbr.rel (0) target = $region5
    $region4: #{linear_network_forward.1} parent=1 // pred_region
      _
    $region5: #{linear_network_forward.1} parent=1 // pred_fallthru
      _
    // Predicated region
    $region6: #{linear_network_forward.1} parent=1 // pred_check
      _
    $region7: #{linear_network_forward.1} parent=1 // pred_check_branch
      %14 = sbr.rel (0) target = $region9
    $region8: #{linear_network_forward.1} parent=1 // pred_region
      _
    $region9: #{linear_network_forward.1} parent=1 // pred_fallthru
      _
    // Predicated region
    $region10: #{linear_network_forward.1} parent=1 // pred_check
      _
    $region11: #{linear_network_forward.1} parent=1 // pred_check_branch
      %16 = sbr.rel (0) target = $region13
    $region12: #{linear_network_forward.1} parent=1 // pred_region
      _
    $region13: #{linear_network_forward.1} parent=1 // pred_fallthru
      _
    // Predicated region
    $region14: #{linear_network_forward.1} parent=1 // pred_check
      _
    $region15: #{linear_network_forward.1} parent=1 // pred_check_branch
      %18 = sbr.rel (0) target = $region17
    $region16: #{linear_network_forward.1} parent=1 // pred_region
      _
    $region17: #{linear_network_forward.1} parent=1 // pred_fallthru
      _
    // Predicated region
    $region18: #{linear_network_forward.1} parent=1 // pred_check
      _
    $region19: #{linear_network_forward.1} parent=1 // pred_check_branch
      %20 = sbr.rel (0) target = $region21
    $region20: #{linear_network_forward.1} parent=1 // pred_region
      _
    $region21: #{linear_network_forward.1} parent=1 // pred_fallthru
      _
    %v21 = vld [vmem:[%s0] sm:$0xff]
    %v22 = vld [vmem:[%s1] sm:$0xff]
    %v23 = vld [vmem:[%s1 + $0x8] sm:$0xff]
    %v24 = vld [vmem:[%s2] sm:$0x1]
    %v26 = vperm.slane %v24, 0
    %vm28 = vcmask 130048
    %v30 = vsel %vm28, %v21, 0
    %32 = vmatpush.msra.mxu0 0.0
    %33 = vmatpush.msra.mxu0 0.0
    %34 = vmatpush.msra.mxu0 0.0
    %35 = vmatpush.msra.mxu0 0.0
    %36 = vmatpush.msra.mxu0 0.0
    %37 = vmatpush.msra.mxu0 0.0
    %38 = vmatpush.msra.mxu0 0.0
    %39 = vmatpush.msra.mxu0 0.0
    %40 = vmatpush.msra.mxu0 0.0
    %41 = vmatpush.msra.mxu0 0.0
    %42 = vmatpush.msra.mxu0 0.0
    %43 = vmatpush.msra.mxu0 0.0
    %44 = vmatpush.msra.mxu0 0.0
    %45 = vmatpush.msra.mxu0 0.0
    %46 = vmatpush.msra.mxu0 %v23
    %47 = vmatpush.msra.mxu0 %v22
    %48 = vmatmul.f32.gmra.mxu0 %v30
    %v49 = vpop.f32.mrf.mxu0
    %v50 = vadd.f32 %v26, %v49
    %51 = vdwg.mxu0
    %v52 = vtanh.pop %v50
    %v53 = vld [vmem:[%s3] sm:$0xff]
    %v54 = vld [vmem:[%s3 + $0x8] sm:$0xff]
    %v55 = vld [vmem:[%s3 + $0x10] sm:$0xff]
    %v56 = vld [vmem:[%s3 + $0x18] sm:$0xff]
    %v57 = vld [vmem:[%s4] sm:$0x1]
    %v59 = vperm.slane %v57, 0
    %vm61 = vcmask 261120
    %v63 = vsel %vm61, %v52, 0
    %65 = vmatpush.msra.mxu0 0.0
    %66 = vmatpush.msra.mxu0 0.0
    %67 = vmatpush.msra.mxu0 0.0
    %68 = vmatpush.msra.mxu0 0.0
    %69 = vmatpush.msra.mxu0 0.0
    %70 = vmatpush.msra.mxu0 0.0
    %71 = vmatpush.msra.mxu0 0.0
    %72 = vmatpush.msra.mxu0 0.0
    %73 = vmatpush.msra.mxu0 0.0
    %74 = vmatpush.msra.mxu0 0.0
    %75 = vmatpush.msra.mxu0 0.0
    %76 = vmatpush.msra.mxu0 0.0
    %77 = vmatpush.msra.mxu0 %v56
    %78 = vmatpush.msra.mxu0 %v55
    %79 = vmatpush.msra.mxu0 %v54
    %80 = vmatpush.msra.mxu0 %v53
    %81 = vmatmul.f32.gmra.mxu0 %v63
    %v82 = vpop.f32.mrf.mxu0
    %v83 = vadd.f32 %v59, %v82
    %84 = vdwg.mxu0
    %v85 = vsub.f32 0.0, %v83
    %v86 = vmul.f32 %v85, 1.442695
    %v87 = vpow.pop %v86
    %v88 = vadd.f32 %v87, 1.0
    %v89 = vrcp.pop %v88
    %v90 = vmul.f32 %v88, %v89
    %v91 = vsub.f32 1.0, %v90
    %v92 = vmul.f32 %v89, %v91
    %v93 = vadd.f32 %v89, %v92
    %vm94 = vweird.f32 %v88
    %vm95 = vweird.f32 %v89
    %vm96 = vmor %vm94, %vm95
    %v97 = vsel %vm96, %v89, %v93
    %v98 = vand.u32 2147483647, %v88
    %vm99 = vcmp.eq.f32.partialorder %v98, 8.507059e+37
    %v100 = vand.u32 %v88, 2147483648
    %v101 = vor.u32 1.1754944e-38, %v100
    %v102 = vsel %vm99, %v101, %v97
    %v103 = vmul.f32 1.0, %v102
    %vm104 = vcmask 64512
    %105 = vst.msk [vmem:[#allocation2] sm:$0xff] %vm104, %v103
    // Predicated region
    $region22: #{linear_network_forward.1} parent=1 // pred_check
      _
    $region23: #{linear_network_forward.1} parent=1 // pred_check_branch
      %107 = sbr.rel (0) target = $region25
    $region24: #{linear_network_forward.1} parent=1 // pred_region
      %109 = vsyncadd [#allocation3], 0
      %s111 = sshll.u32 [#allocation2], 4
      %s112 = int_to_ptr.vmem [resolvable:$true] %s111
      %s113 = sshll.u32 %s5, 4
      %s114 = int_to_ptr.hbm [resolvable:$true] %s113
      %116 = dma.vmem_to_hbm [thread:$0]  %s112, 128, %s114, [#allocation3]
    $region25: #{linear_network_forward.1} parent=1 // pred_fallthru
      _
    // Predicated region
    $region26: #{linear_network_forward.1} parent=1 // pred_check
      _
    $region27: #{linear_network_forward.1} parent=1 // pred_check_branch
      %118 = sbr.rel (0) target = $region29
    $region28: #{linear_network_forward.1} parent=1 // pred_region
      %120 = dma.done [#allocation3], 128
    $region29: #{linear_network_forward.1} parent=1 // pred_fallthru
      _
    %121 = vsyncpa [#allocation3], 1

</llo_original>
